<compile_context>
chip_gen: v7x
topology: tpu7x:2x2x1
jax: 0.10.0
libtpu: 0.0.40
codegen_flags: <defaults>
</compile_context>

<pallas_src>
import functools

import jax
import jax.numpy as jnp
from jax.experimental import pallas as pl
from jax.experimental.pallas import tpu as pltpu


def _round_up(n, m):
    return (n + m - 1) // m * m


def _vmem_capacity_bytes():
    try:
        return int(pltpu.get_tpu_info().vmem_capacity_bytes)
    except Exception:
        return 64 * 1024 * 1024  # conservative fallback (v7x per-core VMEM)


# ---------------------------------------------------------------------------
# Path A: small vocab -> VMEM-resident table + one-hot MXU gather.
# ---------------------------------------------------------------------------
def _onehot_kernel(ids_ref, w_ref, o_ref):
    # ids_ref: (T, 1) int32   w_ref: (V, D) resident table   o_ref: (T, D)
    t = o_ref.shape[0]
    v = w_ref.shape[0]
    # Grid-invariant iota compared against the id column (single vocab tile,
    # so no per-tile offset is folded into the iota).
    iota = jax.lax.broadcasted_iota(jnp.int32, (t, v), 1)
    onehot = (iota == ids_ref[...]).astype(w_ref.dtype)
    # Write directly to the output block: no f32 accumulator scratch needed.
    o_ref[...] = jnp.dot(
        onehot, w_ref[...], preferred_element_type=jnp.float32
    ).astype(o_ref.dtype)


def _embed_resident(ids2d, weight, T, vmem_cap):
    n_pad = ids2d.shape[0]
    V, D = weight.shape
    itemsize = weight.dtype.itemsize
    # VMEM budget: 1x table (single-buffered) + 2x (T, D) out + 2x lane-padded
    # (T, 1) ids + (T, V) iota/one-hot temporaries.
    est = (V * D * itemsize + 2 * T * D * itemsize + 2 * T * 128 * 4
           + T * V * (4 + itemsize))
    vmem_limit = min(vmem_cap, max(2 * est, 16 * 1024 * 1024))

    return pl.pallas_call(
        _onehot_kernel,
        out_shape=jax.ShapeDtypeStruct((n_pad, D), weight.dtype),
        grid_spec=pltpu.PrefetchScalarGridSpec(
            num_scalar_prefetch=0,
            grid=(n_pad // T,),
            in_specs=[
                pl.BlockSpec((T, 1), lambda i: (i, 0)),        # ids block
                # Whole table, constant block index -> fetched once; single
                # buffer halves its VMEM footprint (matters most on v7x).
                pl.BlockSpec((V, D), lambda i: (0, 0),
                             pipeline_mode=pl.Buffered(1)),
            ],
            out_specs=pl.BlockSpec((T, D), lambda i: (i, 0)),
        ),
        compiler_params=pltpu.CompilerParams(
            dimension_semantics=("parallel",),
            vmem_limit_bytes=vmem_limit,
        ),
    )(ids2d, weight)


# ---------------------------------------------------------------------------
# Path B: general case -> scalar-prefetched ids + manual row-gather DMAs.
# ---------------------------------------------------------------------------
def _gather_kernel(ids_ref, w_hbm, o_ref, sem, *, inflight):
    # ids_ref: (N_pad,) int32 in SMEM (scalar prefetch)
    # w_hbm:   (V, D) table left in HBM (memory_space=pl.ANY)
    # o_ref:   (T, D) output block in VMEM; rows are DMA'd straight into it
    # sem:     (inflight,) DMA semaphores
    T = o_ref.shape[0]
    base = pl.program_id(0) * T
    depth = min(inflight, T)

    def row_copy(t, slot):
        row = ids_ref[base + t]
        return pltpu.make_async_copy(
            w_hbm.at[pl.ds(row, 1)], o_ref.at[pl.ds(t, 1)], sem.at[slot])

    # Prime the window: `depth` row DMAs in flight (static unroll).
    for t in range(depth):
        row_copy(t, t).start()

    @pl.loop(0, T)
    def _(t):
        slot = t % depth
        row_copy(t, slot).wait()          # row t landed in o_ref[t]
        nxt = t + depth

        @pl.when(nxt < T)
        def _():
            row_copy(nxt, slot).start()   # keep `depth` copies in flight


def _embed_gather(ids1d, weight, T, vmem_cap, inflight):
    n_pad = ids1d.shape[0]
    V, D = weight.shape
    itemsize = weight.dtype.itemsize
    est = 2 * T * D * itemsize            # double-buffered output block
    vmem_limit = min(vmem_cap, max(4 * est, 16 * 1024 * 1024))

    kernel = functools.partial(_gather_kernel, inflight=inflight)
    # NOTE: ids live in SMEM; for extremely large N (>~256K tokens) they would
    # need to be prefetched in blocks instead of all at once.
    return pl.pallas_call(
        kernel,
        out_shape=jax.ShapeDtypeStruct((n_pad, D), weight.dtype),
        grid_spec=pltpu.PrefetchScalarGridSpec(
            num_scalar_prefetch=1,                         # ids -> SMEM
            grid=(n_pad // T,),
            in_specs=[pl.BlockSpec(memory_space=pl.ANY)],  # table stays in HBM
            out_specs=pl.BlockSpec((T, D), lambda i, ids: (i, 0)),
            scratch_shapes=[pltpu.SemaphoreType.DMA((inflight,))],
        ),
        compiler_params=pltpu.CompilerParams(
            dimension_semantics=("parallel",),
            vmem_limit_bytes=vmem_limit,
        ),
    )(ids1d, weight)


# ---------------------------------------------------------------------------
# Wrapper: semantics of torch `self.weight[x]`.
# ---------------------------------------------------------------------------
def custom_embedding(x, weight, *, max_token_block=512,
                     resident_table_bytes=None, inflight=8):
    """Pallas equivalent of `weight[x]` (torch.nn.Embedding forward)."""
    V, D = weight.shape
    out_shape = tuple(x.shape) + (D,)

    if x.size == 0:  # degenerate (zero-size grid) guard
        return jnp.zeros(out_shape, weight.dtype)

    # Clamp ids (torch would raise on OOB; clamping guarantees no OOB access).
    flat_ids = jnp.clip(x.reshape(-1).astype(jnp.int32), 0, V - 1)
    N = flat_ids.shape[0]

    # Token block: balance blocks so padding waste stays < 8 tokens per block
    # (e.g. N=520 -> 2 blocks of 264, not a single 1024 pad).
    n_blocks = -(-N // max_token_block)
    T = _round_up(-(-N // n_blocks), 8)
    N_pad = _round_up(N, T)
    if N_pad != N:
        flat_ids = jnp.pad(flat_ids, (0, N_pad - N))  # pad ids only, never the table

    vmem_cap = _vmem_capacity_bytes()
    if resident_table_bytes is None:
        resident_table_bytes = vmem_cap // 4
    table_bytes = V * D * weight.dtype.itemsize
    onehot_tmp_bytes = T * V * (4 + weight.dtype.itemsize)
    # One-hot resident path only when both the (single-buffered) table and the
    # (T, V) one-hot temporaries comfortably fit VMEM; otherwise the row-gather
    # DMA path (N*D bytes of HBM traffic, no wasted MXU/VALU work) wins.
    use_resident = (table_bytes <= resident_table_bytes
                    and onehot_tmp_bytes <= vmem_cap // 8)

    if use_resident:
        out_flat = _embed_resident(flat_ids.reshape(N_pad, 1), weight, T, vmem_cap)
    else:
        out_flat = _embed_gather(flat_ids, weight, T, vmem_cap, inflight)

    return out_flat[:N].reshape(out_shape)


if __name__ == "__main__":
    key = jax.random.PRNGKey(0)
    k_w, k_x = jax.random.split(key)

    num_embeddings = 32
    embedding_dim = 128
    batch, seq = 2, 8

    # Deterministic parameter init matching 0.01 * randn((V, D)).
    weight = 0.01 * jax.random.normal(
        k_w, (num_embeddings, embedding_dim), dtype=jnp.float32)
    x = jax.random.randint(k_x, (batch, seq), 0, num_embeddings, dtype=jnp.int32)

    ref = jnp.take(weight, x, axis=0)

    # Path A: small vocab -> VMEM-resident one-hot MXU gather.
    out_resident = jax.block_until_ready(custom_embedding(x, weight))
    assert out_resident.shape == (batch, seq, embedding_dim)
    assert out_resident.dtype == weight.dtype
    assert jnp.allclose(out_resident, ref), "resident path mismatch vs reference"

    # Path B: force the large-vocab manual row-gather DMA path and check it too.
    out_gather = jax.block_until_ready(
        custom_embedding(x, weight, resident_table_bytes=0))
    assert jnp.allclose(out_gather, ref), "gather path mismatch vs reference"

    print("KERNEL_OK")
</pallas_src>

<mosaic_0001>
module attributes {stable_mosaic.version = 11 : i64} {
  func.func @_onehot_kernel(%arg0: i32, %arg1: memref<16x1xi32, #tpu.memory_space<vmem>>, %arg2: memref<32x128xf32, #tpu.memory_space<vmem>>, %arg3: memref<16x128xf32, #tpu.memory_space<vmem>>) attributes {dimension_semantics = [#tpu.dimension_semantics<parallel>], iteration_bounds = array<i64: 1>, scalar_prefetch = 0 : i64, scratch_operands = 0 : i64, tpu.core_type = #tpu.core_type<tc>, window_params = [{transform_indices = @transform_0, window_bounds = array<i64: 16, 1>}, {pipeline_mode = #tpu.pipeline_mode<synchronous>, transform_indices = @transform_1, window_bounds = array<i64: 32, 128>}, {transform_indices = @transform_2, window_bounds = array<i64: 16, 128>}]} {
    %0 = tpu.iota {dimensions = array<i32: 1>} : vector<16x32xi32>
    %c0 = arith.constant 0 : index
    %c0_0 = arith.constant 0 : index
    %1 = vector.load %arg1[%c0, %c0_0] : memref<16x1xi32, #tpu.memory_space<vmem>>, vector<16x1xi32>
    %2 = vector.broadcast %1 : vector<16x1xi32> to vector<16x32xi32>
    %3 = arith.cmpi eq, %0, %2 : vector<16x32xi32>
    %4 = arith.extui %3 : vector<16x32xi1> to vector<16x32xi32>
    %5 = arith.sitofp %4 : vector<16x32xi32> to vector<16x32xf32>
    %c0_1 = arith.constant 0 : index
    %c0_2 = arith.constant 0 : index
    %6 = vector.load %arg2[%c0_1, %c0_2] : memref<32x128xf32, #tpu.memory_space<vmem>>, vector<32x128xf32>
    %cst = arith.constant dense<0.000000e+00> : vector<16x128xf32>
    %7 = tpu.matmul %5, %6, %cst {dimension_numbers = #tpu.dot_dimension_numbers<[1], [0], [0], [1], [0, 0, 1, 1], [], []>} : vector<16x32xf32>, vector<32x128xf32>, vector<16x128xf32> -> vector<16x128xf32>
    %c0_3 = arith.constant 0 : index
    %c0_4 = arith.constant 0 : index
    %8 = vector.load %arg3[%c0_3, %c0_4] : memref<16x128xf32, #tpu.memory_space<vmem>>, vector<16x128xf32>
    tpu.vector_store %arg3[%c0_3, %c0_4], %7 {strides = array<i32>} : memref<16x128xf32, #tpu.memory_space<vmem>>, vector<16x128xf32>,
    return
  }
  func.func @transform_0(%arg0: i32) -> (i32, i32) {
    %c0_i32 = arith.constant 0 : i32
    %c0_i32_0 = arith.constant 0 : i32
    return %arg0, %c0_i32 : i32, i32
  }
  func.func @transform_1(%arg0: i32) -> (i32, i32) {
    %c0_i32 = arith.constant 0 : i32
    %c0_i32_0 = arith.constant 0 : i32
    %c0_i32_1 = arith.constant 0 : i32
    return %c0_i32, %c0_i32_0 : i32, i32
  }
  func.func @transform_2(%arg0: i32) -> (i32, i32) {
    %c0_i32 = arith.constant 0 : i32
    %c0_i32_0 = arith.constant 0 : i32
    return %arg0, %c0_i32 : i32, i32
  }
}

</mosaic_0001>

<llo_original>
// kernel: tpu_custom_call.1
$region0: #{tpu_custom_call.1}
  #allocation0 [shape = 'u32[]', space=smem, size = 0x4, offset = 0x4, fixed_abs, tag = 'smem constant byte address 0x4 - core index']
  #allocation1 [shape = 'u32[144,128]{1,0:T(1,128)}', space=vmem, size = 0x12000, scoped, tag = 'internal scratch']
  %s0 = inlined_call_operand.vmem [shape: s32[16,1], index: 0, kind: input, shape index: {}]
  %s1 = inlined_call_operand.hbm [shape: f32[32,128], index: 1, kind: input, shape index: {}]
  %s2 = inlined_call_operand.hbm [shape: f32[16,128], index: 2, kind: output, shape index: {}]
  %s3 = sld [smem:[#allocation0]]
  $region22: #{tpu_custom_call.1} parent=0
    _
  %s5 = ssub.s32 1, %s3
  %s6 = scalar_select 0, %s5, %s3
  $region1: #{tpu_custom_call.1} parent=0
    #allocation2 [shape = 'u8[16384]{0}', space=vmem, size = 0x4000, scoped, tag = 'input window, operand 1, single buffered']
    #allocation3 [shape = 's32[1]{0}', space=sflag, size = 0x4, scoped, tag = 'scoped memory for tpu_custom_call.1']
    #allocation4 [shape = 's32[1]{0}', space=sflag, size = 0x4, scoped, tag = 'scoped memory for tpu_custom_call.1']
    #allocation5 [shape = 'u8[8192]{0}', space=vmem, size = 0x2000, scoped, tag = 'output window, operand 0, single buffered']
    %7 = vsyncpa [#allocation3], 0
    %8 = vsyncpa [#allocation4], 0
    // Predicated region
    $region2: #{tpu_custom_call.1} parent=1 // pred_check
      _
    $region3: #{tpu_custom_call.1} parent=1 // pred_check_branch
      %10 = sbr.rel (0) target = $region5
    $region4: #{tpu_custom_call.1} parent=1 // pred_region
      _
    $region5: #{tpu_custom_call.1} parent=1 // pred_fallthru
      _
    // Predicated region
    $region6: #{tpu_custom_call.1} parent=1 // pred_check
      _
    $region7: #{tpu_custom_call.1} parent=1 // pred_check_branch
      %12 = sbr.rel (0) target = $region9
    $region8: #{tpu_custom_call.1} parent=1 // pred_region
      %s14 = ssub.s32 512, 512
      %15 = vsyncadd [#allocation3], %s14
      %s16 = sshll.u32 [#allocation2], 4
      %s17 = int_to_ptr.vmem [resolvable:$true] %s16
      %22 = dma.hbm_to_vmem [thread:$0]  %s1, 512, %s17, [#allocation3], 128, 128, 8
    $region9: #{tpu_custom_call.1} parent=1 // pred_fallthru
      _
    // Predicated region
    $region10: #{tpu_custom_call.1} parent=1 // pred_check
      _
    $region11: #{tpu_custom_call.1} parent=1 // pred_check_branch
      %24 = sbr.rel (0) target = $region13
    $region12: #{tpu_custom_call.1} parent=1 // pred_region
      %25 = dma.done [#allocation3], 512
    $region13: #{tpu_custom_call.1} parent=1 // pred_fallthru
      _
    %v26 = vlaneseq
    %v27 = vand.u32 %v26, 127
    %v28 = vld [vmem:[%s0] sm:$0xff]
    %v29 = vld [vmem:[%s0 + $0x8] sm:$0xff]
    %30 = vset.pattern.permute.xlu0 0
    %31 = vperm.xlu0 %30, %v28
    %v32 = vpop.permute.xlu0 %31
    %33 = vset.pattern.permute.xlu0 0
    %34 = vperm.xlu0 %33, %v29
    %v35 = vpop.permute.xlu0 %34
    %vm36 = vcmp.eq.s32.totalorder %v27, %v32
    %vm37 = vcmp.eq.s32.totalorder %v27, %v35
    %v38 = vsel %vm36, 1, 0
    %v39 = vsel %vm37, 1, 0
    %v40 = vcvt.s32.f32 %v38
    %v41 = vcvt.s32.f32 %v39
    %v42 = vld [vmem:[#allocation2] sm:$0xff]
    %v43 = vld [vmem:[#allocation2 + $0x8] sm:$0xff]
    %v44 = vld [vmem:[#allocation2 + $0x10] sm:$0xff]
    %v45 = vld [vmem:[#allocation2 + $0x18] sm:$0xff]
    %vm46 = vcmask 261120
    %v48 = vsel %vm46, %v40, 0
    %v51 = vsel %vm46, %v41, 0
    %53 = vmatprep.subr.mxu0 0.0
    %54 = vmatpush1.msra.mxu0 %v42
    %55 = vmatprep.subr.mxu0 0.0
    %56 = vmatpush1.msra.mxu0 %v43
    %57 = vmatprep.subr.mxu0 0.0
    %58 = vmatpush1.msra.mxu0 %v44
    %59 = vmatprep.subr.mxu0 0.0
    %60 = vmatpush1.msra.mxu0 %v45
    %61 = vmatprep.subr.mxu0 0.0
    %62 = vmatpush1.msra.mxu0 0.0
    %63 = vmatprep.subr.mxu0 0.0
    %64 = vmatpush1.msra.mxu0 0.0
    %65 = vmatprep.subr.mxu0 0.0
    %66 = vmatpush1.msra.mxu0 0.0
    %67 = vmatprep.subr.mxu0 0.0
    %68 = vmatpush1.msra.mxu0 0.0
    %69 = vmatprep.subr.mxu0 0.0
    %70 = vmatpush1.msra.mxu0 0.0
    %71 = vmatprep.subr.mxu0 0.0
    %72 = vmatpush1.msra.mxu0 0.0
    %73 = vmatprep.subr.mxu0 0.0
    %74 = vmatpush1.msra.mxu0 0.0
    %75 = vmatprep.subr.mxu0 0.0
    %76 = vmatpush1.msra.mxu0 0.0
    %77 = vmatprep.subr.mxu0 0.0
    %78 = vmatpush1.msra.mxu0 0.0
    %79 = vmatprep.subr.mxu0 0.0
    %80 = vmatpush1.msra.mxu0 0.0
    %81 = vmatprep.subr.mxu0 0.0
    %82 = vmatpush1.msra.mxu0 0.0
    %83 = vmatprep.subr.mxu0 0.0
    %84 = vmatpush1.msra.mxu0 0.0
    %85 = vmatprep.subr.mxu0 0.0
    %86 = vmatpush1.msra.mxu0 0.0
    %87 = vmatprep.subr.mxu0 0.0
    %88 = vmatpush1.msra.mxu0 0.0
    %89 = vmatprep.subr.mxu0 0.0
    %90 = vmatpush1.msra.mxu0 0.0
    %91 = vmatprep.subr.mxu0 0.0
    %92 = vmatpush1.msra.mxu0 0.0
    %93 = vmatprep.subr.mxu0 0.0
    %94 = vmatpush1.msra.mxu0 0.0
    %95 = vmatprep.subr.mxu0 0.0
    %96 = vmatpush1.msra.mxu0 0.0
    %97 = vmatprep.subr.mxu0 0.0
    %98 = vmatpush1.msra.mxu0 0.0
    %99 = vmatprep.subr.mxu0 0.0
    %100 = vmatpush1.msra.mxu0 0.0
    %101 = vmatprep.subr.mxu0 0.0
    %102 = vmatpush1.msra.mxu0 0.0
    %103 = vmatprep.subr.mxu0 0.0
    %104 = vmatpush1.msra.mxu0 0.0
    %105 = vmatprep.subr.mxu0 0.0
    %106 = vmatpush1.msra.mxu0 0.0
    %107 = vmatprep.subr.mxu0 0.0
    %108 = vmatpush1.msra.mxu0 0.0
    %109 = vmatprep.subr.mxu0 0.0
    %110 = vmatpush1.msra.mxu0 0.0
    %111 = vmatprep.subr.mxu0 0.0
    %112 = vmatpush1.msra.mxu0 0.0
    %113 = vmatprep.subr.mxu0 0.0
    %114 = vmatpush1.msra.mxu0 0.0
    %115 = vmatprep.subr.mxu0 0.0
    %116 = vmatpush1.msra.mxu0 0.0
    %117 = vmatprep.mubr.f32.mxu0 0.0
    %118 = vmatmul.mubr.f32.gmra.mrb[0].mxu0 %v48
    %v119 = vpop.f32.mrb[0].mxu0
    %v120 = vadd.f32 0.0, %v119
    %v121 = vpop.f32.mrb[0].mxu0
    %122 = vmatprep.mubr.f32.mxu0 0.0
    %123 = vmatmul.mubr.f32.gmra.mrb[0].mxu0 %v51
    %v124 = vpop.f32.mrb[0].mxu0
    %v125 = vadd.f32 0.0, %v124
    %v126 = vpop.f32.mrb[0].mxu0
    %127 = vdwg.mxu0
    %128 = vst [vmem:[#allocation5] sm:$0xff] %v120
    %129 = vst [vmem:[#allocation5 + $0x8] sm:$0xff] %v125
    // Predicated region
    $region14: #{tpu_custom_call.1} parent=1 // pred_check
      _
    $region15: #{tpu_custom_call.1} parent=1 // pred_check_branch
      %131 = sbr.rel (0) target = $region17
    $region16: #{tpu_custom_call.1} parent=1 // pred_region
      %s133 = ssub.s32 256, 256
      %134 = vsyncadd [#allocation4], %s133
      %s135 = sshll.u32 [#allocation5], 4
      %s136 = int_to_ptr.vmem [resolvable:$true] %s135
      %141 = dma.vmem_to_hbm [thread:$0]  %s136, 256, %s2, [#allocation4], 128, 128, 8
    $region17: #{tpu_custom_call.1} parent=1 // pred_fallthru
      _
    // Predicated region
    $region18: #{tpu_custom_call.1} parent=1 // pred_check
      _
    $region19: #{tpu_custom_call.1} parent=1 // pred_check_branch
      %143 = sbr.rel (0) target = $region21
    $region20: #{tpu_custom_call.1} parent=1 // pred_region
      %144 = dma.done [#allocation4], 256
    $region21: #{tpu_custom_call.1} parent=1 // pred_fallthru
      _
    %145 = vsyncpa [#allocation3], 1
    %146 = vsyncpa [#allocation4], 1

</llo_original>
